<compile_context>
chip_gen: v7x
topology: tpu7x:2x2x1
jax: 0.10.0
libtpu: 0.0.40
codegen_flags: <defaults>
</compile_context>

<pallas_src>
import functools

import jax
import jax.numpy as jnp
from jax.experimental import pallas as pl
from jax.experimental.pallas import tpu as pltpu


def _pair_score_kernel(d_ref, out_ref, *, n, tm, num_strips, band_align):
    # d_ref:   (tm, n) strip of d[0] (batch dim squeezed by the BlockSpec)
    # out_ref: (8, 128) f32 tile -- the strip's scalar partial, broadcast across the tile
    i = pl.program_id(0)
    r0 = i * tm                              # first global row of this strip
    # Band start, clamped so the (tm, tm) slice always stays inside [0, n) even when the
    # last strip is ragged (r0 + tm > n).  Columns pushed left of r0 by the clamp are still
    # masked exactly inside the band, and the bulk weight for them is 0 -> no double count.
    bs = jnp.minimum(r0, n - tm)
    if band_align > 1:
        bs = pl.multiple_of(bs, band_align)  # lane-alignment hint for the dynamic slice

    # ---- diagonal band: exact antisymmetric sign on columns [bs, bs+tm) ----
    d_band = d_ref[:, pl.ds(bs, tm)].astype(jnp.float32)              # (tm, tm)
    grow = jax.lax.broadcasted_iota(jnp.int32, (tm, tm), 0) + r0      # global row index
    gcol = jax.lax.broadcasted_iota(jnp.int32, (tm, tm), 1) + bs      # global col index
    zero = jnp.zeros_like(d_band)
    band = jnp.where(gcol > grow, d_band, jnp.where(gcol < grow, -d_band, zero))
    rowsum = jnp.sum(band, axis=1, keepdims=True)                     # (tm, 1) f32

    # ---- bulk: every column outside the band has a uniform +/-1 weight for this strip ----
    if num_strips > 1:                       # single-strip case is band-only (statically)
        col = jax.lax.broadcasted_iota(jnp.int32, (1, n), 1)
        cw = (col >= bs + tm).astype(jnp.float32) - (col < bs).astype(jnp.float32)
        weighted = d_ref[...].astype(jnp.float32) * cw                # ~2-3 VALU ops/element
        rowsum = rowsum + jnp.sum(weighted, axis=1, keepdims=True)

    # ---- ragged last strip: zero rows past n on the per-row sums only (not per element) ----
    if n % tm != 0:
        rvalid = (jax.lax.broadcasted_iota(jnp.int32, (tm, 1), 0) + r0) < n
        rowsum = jnp.where(rvalid, rowsum, 0.0)

    partial = jnp.sum(rowsum)                                         # scalar f32
    out_ref[...] = jnp.zeros((8, 128), jnp.float32) + partial


def _vmem_capacity_bytes(default_bytes=64 * 1024 * 1024):
    """Physical VMEM of the local chip; conservative 64 MiB (v7x) fallback."""
    try:
        info = pltpu.get_tpu_info()
        for attr in ("vmem_capacity_bytes", "vmem_bytes", "vmem_size_bytes"):
            val = getattr(info, attr, None)
            if val:
                return int(val)
    except Exception:
        pass
    return default_bytes


def _choose_tm(n, itemsize, budget_bytes):
    """Largest strip height whose per-step working set fits the VMEM budget."""
    def step_bytes(tm):
        return (2 * tm * n * itemsize        # double-buffered input strip
                + 3 * tm * n * 4             # f32 temporaries (upcast, weighted product)
                + 16 * tm * tm               # band temporaries (slice, iotas, selects)
                + (1 << 20))                 # slack for Mosaic internals

    if n <= 1024 and step_bytes(n) <= budget_bytes:
        return n                             # single strip: band-only path
    tm = 1024                                # bigger strips amortize per-step overhead
    while tm > 8 and step_bytes(tm) > budget_bytes:
        tm //= 2
    return min(tm, n)


def _pair_score_pallas(d: jax.Array, *, tm=None) -> jax.Array:
    B, n, n2 = d.shape
    assert n == n2, "expects a square pairwise score matrix"
    assert B >= 1
    itemsize = jnp.dtype(d.dtype).itemsize

    vmem_bytes = _vmem_capacity_bytes()
    vmem_limit = int(vmem_bytes * 0.75)      # ~96 MiB on v5e/v6e, ~48 MiB on v7x
    if tm is None:
        tm = _choose_tm(n, itemsize, int(vmem_bytes * 0.6))
    tm = min(tm, n)
    assert tm == n or tm % 8 == 0, "strip height must be a multiple of 8 (or the full n)"
    num_strips = pl.cdiv(n, tm)

    # Alignment guarantee for the dynamic band-slice start (perf hint only).
    if num_strips == 1 or (tm % 128 == 0 and n % 128 == 0):
        band_align = 128
    elif n % 8 == 0:
        band_align = 8
    else:
        band_align = 1

    kernel = functools.partial(_pair_score_kernel, n=n, tm=tm,
                               num_strips=num_strips, band_align=band_align)
    partials = pl.pallas_call(
        kernel,
        out_shape=jax.ShapeDtypeStruct((num_strips, 8, 128), jnp.float32),
        grid=(num_strips,),
        in_specs=[pl.BlockSpec((None, tm, n), lambda i: (0, i, 0))],
        out_specs=pl.BlockSpec((None, 8, 128), lambda i: (i, 0, 0)),
        compiler_params=pltpu.CompilerParams(
            dimension_semantics=("parallel",),   # independent strips -> both TCs on v7x
            vmem_limit_bytes=vmem_limit,
        ),
        cost_estimate=pl.CostEstimate(
            flops=2 * n * n,
            transcendentals=0,
            bytes_accessed=n * n * itemsize + num_strips * 8 * 128 * 4,
        ),
    )(d)
    # Tiny per-strip partial vector; final reduce in plain JAX.
    return jnp.sum(partials[:, 0, 0])


def pair_score_objective(d: jax.Array, perm=None, *, tm=None) -> jax.Array:
    """d: [B, n, n] float array. Returns scalar float32 = (mask * d[0]).sum().

    `perm` is accepted for parity with the PyTorch forward signature (unused there too).
    """
    del perm
    return _pair_score_pallas(d, tm=tm)


def _reference(d0: jax.Array) -> jax.Array:
    n = d0.shape[-1]
    mask = jnp.triu(jnp.ones((n, n), jnp.float32), k=1)
    mask = mask - mask.T
    return jnp.sum(mask * d0.astype(jnp.float32))


if __name__ == "__main__":
    key = jax.random.PRNGKey(0)
    k1, k2, k3 = jax.random.split(key, 3)

    # Test 1: small shape consistent with the module (B=2, n=16) -> single-strip band path.
    d_small = jax.random.normal(k1, (2, 16, 16), dtype=jnp.float32)
    res = jax.block_until_ready(pair_score_objective(d_small))
    ref = _reference(d_small[0])
    assert jnp.allclose(res, ref, rtol=1e-5, atol=1e-4), (res, ref)

    # Test 2: multi-strip grid, evenly divided (n=384, tm=128 -> 3 strips): bulk + band paths.
    d_mid = jax.random.normal(k2, (2, 384, 384), dtype=jnp.float32)
    res = jax.block_until_ready(pair_score_objective(d_mid, tm=128))
    ref_mid = _reference(d_mid[0])
    assert jnp.allclose(res, ref_mid, rtol=1e-4, atol=1e-2), (res, ref_mid)

    # Test 3: ragged last strip (n=384, tm=256 -> 2 strips, last half-padded):
    # exercises the clamped band start and the per-row validity mask.
    res = jax.block_until_ready(pair_score_objective(d_mid, tm=256))
    assert jnp.allclose(res, ref_mid, rtol=1e-4, atol=1e-2), (res, ref_mid)

    # Test 4: bf16 input with forced small strips (n=256, tm=64 -> 4 strips).
    d_bf16 = jax.random.normal(k3, (2, 256, 256), dtype=jnp.float32).astype(jnp.bfloat16)
    res = jax.block_until_ready(pair_score_objective(d_bf16, tm=64))
    ref_bf16 = _reference(d_bf16[0])
    assert jnp.allclose(res, ref_bf16, rtol=5e-3, atol=0.5), (res, ref_bf16)

    print("KERNEL_OK")
</pallas_src>

<mosaic_0001>
module attributes {stable_mosaic.version = 11 : i64} {
  func.func @_pair_score_kernel(%arg0: i32, %arg1: memref<1x16x16xf32, #tpu.memory_space<vmem>>, %arg2: memref<1x8x128xf32, #tpu.memory_space<vmem>>) attributes {dimension_semantics = [#tpu.dimension_semantics<parallel>], iteration_bounds = array<i64: 1>, scalar_prefetch = 0 : i64, scratch_operands = 0 : i64, tpu.core_type = #tpu.core_type<tc>, window_params = [{transform_indices = @transform_0, window_bounds = array<i64: 1, 16, 16>}, {transform_indices = @transform_1, window_bounds = array<i64: 1, 8, 128>}]} {
    %c16_i32 = arith.constant 16 : i32
    %0 = arith.muli %arg0, %c16_i32 : i32
    %c0_i32 = arith.constant 0 : i32
    %1 = arith.minsi %0, %c0_i32 : i32
    %2 = tpu.assume_multiple %1, 128 : i32
    %c0 = arith.constant 0 : index
    %c0_0 = arith.constant 0 : index
    %3 = arith.index_cast %2 : i32 to index
    %4 = vector.load %arg1[%c0, %c0_0, %3] : memref<1x16x16xf32, #tpu.memory_space<vmem>>, vector<1x16x16xf32>
    %5 = vector.shape_cast %4 : vector<1x16x16xf32> to vector<16x16xf32>
    %6 = tpu.iota {dimensions = array<i32: 0>} : vector<16x16xi32>
    %7 = vector.broadcast %0 : i32 to vector<16x16xi32>
    %8 = arith.addi %6, %7 : vector<16x16xi32>
    %9 = tpu.iota {dimensions = array<i32: 1>} : vector<16x16xi32>
    %10 = vector.broadcast %2 : i32 to vector<16x16xi32>
    %11 = arith.addi %9, %10 : vector<16x16xi32>
    %cst = arith.constant 0.000000e+00 : f32
    %12 = vector.broadcast %cst : f32 to vector<16x16xf32>
    %13 = arith.cmpi sgt, %11, %8 : vector<16x16xi32>
    %14 = arith.cmpi slt, %11, %8 : vector<16x16xi32>
    %cst_1 = arith.constant 0.000000e+00 : f32
    %15 = vector.broadcast %cst_1 : f32 to vector<16x16xf32>
    %16 = arith.subf %15, %5 : vector<16x16xf32>
    %17 = arith.select %14, %16, %12 : vector<16x16xi1>, vector<16x16xf32>
    %18 = arith.select %13, %5, %17 : vector<16x16xi1>, vector<16x16xf32>
    %cst_2 = arith.constant dense<0.000000e+00> : vector<16xf32>
    %19 = vector.multi_reduction <add>, %18, %cst_2 [1] : vector<16x16xf32> to vector<16xf32>
    %20 = vector.shape_cast %19 : vector<16xf32> to vector<16x1xf32>
    %21 = vector.shape_cast %20 : vector<16x1xf32> to vector<1x16x1xf32>
    %cst_3 = arith.constant dense<0.000000e+00> : vector<1xf32>
    %22 = vector.multi_reduction <add>, %21, %cst_3 [1, 2] : vector<1x16x1xf32> to vector<1xf32>
    %23 = vector.shape_cast %22 : vector<1xf32> to vector<1x1x1xf32>
    %24 = vector.extract %23[0, 0, 0] : f32 from vector<1x1x1xf32>
    %cst_4 = arith.constant 0.000000e+00 : f32
    %25 = vector.broadcast %cst_4 : f32 to vector<8x128xf32>
    %26 = vector.broadcast %24 : f32 to vector<8x128xf32>
    %27 = arith.addf %25, %26 : vector<8x128xf32>
    %c0_5 = arith.constant 0 : index
    %c0_6 = arith.constant 0 : index
    %c0_7 = arith.constant 0 : index
    %28 = vector.load %arg2[%c0_5, %c0_6, %c0_7] : memref<1x8x128xf32, #tpu.memory_space<vmem>>, vector<1x8x128xf32>
    %29 = vector.shape_cast %28 : vector<1x8x128xf32> to vector<8x128xf32>
    %30 = vector.shape_cast %27 : vector<8x128xf32> to vector<1x8x128xf32>
    tpu.vector_store %arg2[%c0_5, %c0_6, %c0_7], %30 {strides = array<i32>} : memref<1x8x128xf32, #tpu.memory_space<vmem>>, vector<1x8x128xf32>,
    return
  }
  func.func @transform_0(%arg0: i32) -> (i32, i32, i32) {
    %c0_i32 = arith.constant 0 : i32
    %c0_i32_0 = arith.constant 0 : i32
    %c0_i32_1 = arith.constant 0 : i32
    return %c0_i32, %arg0, %c0_i32_0 : i32, i32, i32
  }
  func.func @transform_1(%arg0: i32) -> (i32, i32, i32) {
    %c0_i32 = arith.constant 0 : i32
    %c0_i32_0 = arith.constant 0 : i32
    %c0_i32_1 = arith.constant 0 : i32
    return %arg0, %c0_i32, %c0_i32_0 : i32, i32, i32
  }
}

</mosaic_0001>

<llo_original>
// kernel: tpu_custom_call.1
$region0: #{tpu_custom_call.1}
  #allocation0 [shape = 'u32[]', space=smem, size = 0x4, offset = 0x4, fixed_abs, tag = 'smem constant byte address 0x4 - core index']
  #allocation1 [shape = 'u32[144,128]{1,0:T(1,128)}', space=vmem, size = 0x12000, scoped, tag = 'internal scratch']
  %s0 = inlined_call_operand.hbm [shape: f32[2,16,16], index: 0, kind: input, shape index: {}]
  %s1 = inlined_call_operand.hbm [shape: f32[1,8,128], index: 1, kind: output, shape index: {}]
  %s2 = sld [smem:[#allocation0]]
  $region18: #{tpu_custom_call.1} parent=0
    _
  %s4 = ssub.s32 1, %s2
  %s5 = scalar_select 0, %s4, %s2
  $region1: #{tpu_custom_call.1} parent=0
    #allocation2 [shape = 'u8[8192]{0}', space=vmem, size = 0x2000, scoped, tag = 'input window, operand 0, single buffered']
    #allocation3 [shape = 's32[1]{0}', space=sflag, size = 0x4, scoped, tag = 'scoped memory for tpu_custom_call.1']
    #allocation4 [shape = 's32[1]{0}', space=sflag, size = 0x4, scoped, tag = 'scoped memory for tpu_custom_call.1']
    #allocation5 [shape = 'u8[4096]{0}', space=vmem, size = 0x1000, scoped, tag = 'output window, operand 0, single buffered']
    %6 = vsyncpa [#allocation3], 0
    %7 = vsyncpa [#allocation4], 0
    // Predicated region
    $region2: #{tpu_custom_call.1} parent=1 // pred_check
      _
    $region3: #{tpu_custom_call.1} parent=1 // pred_check_branch
      %9 = sbr.rel (0) target = $region5
    $region4: #{tpu_custom_call.1} parent=1 // pred_region
      %s11 = ssub.s32 256, 256
      %12 = vsyncadd [#allocation3], %s11
      %s13 = sshll.u32 [#allocation2], 4
      %s14 = int_to_ptr.vmem [resolvable:$true] %s13
      %19 = dma.hbm_to_vmem [thread:$0]  %s0, 256, %s14, [#allocation3], 128, 128, 8
    $region5: #{tpu_custom_call.1} parent=1 // pred_fallthru
      _
    // Predicated region
    $region6: #{tpu_custom_call.1} parent=1 // pred_check
      _
    $region7: #{tpu_custom_call.1} parent=1 // pred_check_branch
      %21 = sbr.rel (0) target = $region9
    $region8: #{tpu_custom_call.1} parent=1 // pred_region
      %22 = dma.done [#allocation3], 256
    $region9: #{tpu_custom_call.1} parent=1 // pred_fallthru
      _
    %s23 = smul.u32 0, 16
    %p24 = scmp.lt.s32.totalorder %s23, 0
    %s25 = scalar_select %p24, %s23, 0
    %s26 = sshra.s32 %s25, 7
    %s27 = sand.u32 %s25, 127
    %s28 = scalar_lea.vmem [#allocation2], %s26
    %v29 = vld [vmem:[%s28] sm:$0xff]
    %v30 = vld [vmem:[%s28 + $0x8] sm:$0xff]
    %v31 = vlaneseq
    %v32 = vshrl.u32 %v31, 7
    %v33 = vadd.s32 %v32, 8
    %v34 = vstv %s23
    %v35 = vadd.s32 %v32, %v34
    %v36 = vadd.s32 %v33, %v34
    %v37 = vlaneseq
    %v38 = vand.u32 %v37, 127
    %v39 = vstv %s25
    %v40 = vadd.s32 %v38, %v39
    %vm41 = vcmp.gt.s32.totalorder %v40, %v35
    %vm42 = vcmp.gt.s32.totalorder %v40, %v36
    %vm43 = vcmp.lt.s32.totalorder %v40, %v35
    %vm44 = vcmp.lt.s32.totalorder %v40, %v36
    %v45 = vsub.f32 0.0, %v29
    %v46 = vsub.f32 0.0, %v30
    %v47 = vsel %vm43, %v45, 0.0
    %v48 = vsel %vm44, %v46, 0.0
    %v49 = vsel %vm41, %v29, %v47
    %v50 = vsel %vm42, %v30, %v48
    %vm51 = vcmask 130048
    %v52 = vsel %vm51, %v49, 0.0
    %53 = vadd.xlane.f32.xlu0 %v52
    %v54 = vpop.xlane.xlu0 %53
    %v55 = vsel %vm51, %v50, 0.0
    %56 = vadd.xlane.f32.xlu0 %v55
    %v57 = vpop.xlane.xlu0 %56
    %vm58 = vcmask 7168
    %v59 = vsel %vm58, %v54, 0.0
    %v60 = vsel %vm58, %v57, 0.0
    %v61 = vadd.f32 %v59, %v60
    %62 = vadd.xlane.f32.xlu0 %v61
    %v63 = vpop.xlane.xlu0 %62
    %v64 = vrot.slane %v63, 4
    %v65 = vadd.f32 %v63, %v64
    %v66 = vrot.slane %v65, 2
    %v67 = vadd.f32 %v65, %v66
    %v68 = vrot.slane %v67, 1
    %v69 = vadd.f32 %v67, %v68
    %s70 = vtos %v69
    %v71 = vstv %s70
    %v72 = vadd.f32 %v71, 0.0
    %73 = vst [vmem:[#allocation5] sm:$0xff] %v72
    // Predicated region
    $region10: #{tpu_custom_call.1} parent=1 // pred_check
      _
    $region11: #{tpu_custom_call.1} parent=1 // pred_check_branch
      %75 = sbr.rel (0) target = $region13
    $region12: #{tpu_custom_call.1} parent=1 // pred_region
      %s77 = ssub.s32 128, 128
      %78 = vsyncadd [#allocation4], %s77
      %s80 = sshll.u32 [#allocation5], 4
      %s81 = int_to_ptr.vmem [resolvable:$true] %s80
      %83 = dma.vmem_to_hbm [thread:$0]  %s81, 128, %s1, [#allocation4]
    $region13: #{tpu_custom_call.1} parent=1 // pred_fallthru
      _
    // Predicated region
    $region14: #{tpu_custom_call.1} parent=1 // pred_check
      _
    $region15: #{tpu_custom_call.1} parent=1 // pred_check_branch
      %85 = sbr.rel (0) target = $region17
    $region16: #{tpu_custom_call.1} parent=1 // pred_region
      %86 = dma.done [#allocation4], 128
    $region17: #{tpu_custom_call.1} parent=1 // pred_fallthru
      _
    %87 = vsyncpa [#allocation3], 1
    %88 = vsyncpa [#allocation4], 1

</llo_original>
